<compile_context>
chip_gen: v7x
topology: tpu7x:2x2x1
jax: 0.10.0
libtpu: 0.0.40
codegen_flags: <defaults>
</compile_context>

<pallas_src>
import jax
import jax.numpy as jnp
from jax.experimental import pallas as pl
from jax.experimental.pallas import tpu as pltpu


def _gcn_encoder_kernel(a_ref, x_ref, w1_ref, w2_ref, wms_ref, b_ref, aux_ref,
                        out_ref):
    """One grid step = one graph of the batch (refs already squeezed to 2-D)."""
    a = a_ref[...]          # (N, N)            MXU dtype
    x = x_ref[...]          # (N, F_IN_PAD)     MXU dtype
    aux = aux_ref[...]      # (N, 4*F) f32 : [mask_h2 | mask_mu | mask_sig | noise]

    f = w1_ref.shape[1]     # padded hidden width (128)

    b1 = b_ref[0:1, 0:f]        # (1, F)
    b2 = b_ref[0:1, f:2 * f]    # (1, F)
    bms = b_ref[1:2, :]         # (1, 2F)  = [bmu | bs]

    def agg_lin(h, w, b):
        # (A_hat @ h) @ W + b   -- matches DGL GraphConv(norm='both') math.
        agg = jnp.dot(a, h.astype(a.dtype), preferred_element_type=jnp.float32)
        return jnp.dot(agg.astype(w.dtype), w,
                       preferred_element_type=jnp.float32) + b

    # Layer 1
    h1 = jnp.tanh(agg_lin(x, w1_ref[...], b1))
    # Layer 2 + dropout
    h2 = jnp.tanh(agg_lin(h1, w2_ref[...], b2)) * aux[:, 0:f]
    # Fused mu / log_sigma branch: single A_hat @ h2 aggregation, one wide matmul.
    ms = jnp.tanh(agg_lin(h2, wms_ref[...], bms))          # (N, 2F)
    mu = ms[:, 0:f] * aux[:, f:2 * f]
    log_sigma = ms[:, f:2 * f] * aux[:, 2 * f:3 * f]
    sigma = jnp.exp(log_sigma)
    z = mu + sigma * aux[:, 3 * f:4 * f]

    # Lane-dense packed output slab: [mu | sigma | z], each 128-lane aligned.
    out_ref[:, 0:f] = mu
    out_ref[:, f:2 * f] = sigma
    out_ref[:, 2 * f:3 * f] = z


def _pad_last2(x, rows, cols):
    pad = [(0, 0)] * (x.ndim - 2) + [(0, rows - x.shape[-2]),
                                     (0, cols - x.shape[-1])]
    return jnp.pad(x, pad)


def gcn_encoder_forward(a_hat, features, params, drop_masks, noise,
                        *, mxu_dtype=jnp.float32):
    """Fused GCN-VAE encoder forward for a batch of independent graphs.

    a_hat:    (B, N, N)     symmetric-normalized adjacency per graph
    features: (B, N, F_IN)
    params:   w1 (F_IN,F), b1 (1,F), w2/b2, wmu/bmu, ws/bs  (F = hidden width)
    drop_masks: dict of (B, N, F) inverted-dropout masks ("h2", "mu", "sigma")
    noise:    (B, N, F) standard normal
    Returns mu, sigma, z each (B, N, F).
    """
    B, N, _ = a_hat.shape
    f_in = features.shape[-1]
    f_hid = params["w1"].shape[1]

    n_pad = ((N + 7) // 8) * 8
    f_pad = max(128, ((f_hid + 127) // 128) * 128)
    fin_pad = max(128, ((f_in + 127) // 128) * 128)

    # ---- build padded, merged inputs (layout plumbing only) ----
    a_p = _pad_last2(a_hat, n_pad, n_pad).astype(mxu_dtype)
    x_p = _pad_last2(features, n_pad, fin_pad).astype(mxu_dtype)

    w1_p = _pad_last2(params["w1"], fin_pad, f_pad).astype(mxu_dtype)
    w2_p = _pad_last2(params["w2"], f_pad, f_pad).astype(mxu_dtype)
    wms_p = jnp.concatenate([_pad_last2(params["wmu"], f_pad, f_pad),
                             _pad_last2(params["ws"], f_pad, f_pad)],
                            axis=-1).astype(mxu_dtype)       # (F, 2F)

    def pad_b(b):
        return _pad_last2(b, 1, f_pad)
    b_packed = jnp.concatenate(
        [jnp.concatenate([pad_b(params["b1"]), pad_b(params["b2"])], axis=-1),
         jnp.concatenate([pad_b(params["bmu"]), pad_b(params["bs"])], axis=-1)],
        axis=0).astype(jnp.float32)                          # (2, 2F)

    aux = jnp.concatenate(
        [_pad_last2(drop_masks["h2"], n_pad, f_pad),
         _pad_last2(drop_masks["mu"], n_pad, f_pad),
         _pad_last2(drop_masks["sigma"], n_pad, f_pad),
         _pad_last2(noise, n_pad, f_pad)],
        axis=-1).astype(jnp.float32)                         # (B, N, 4F)

    grid_spec = pltpu.PrefetchScalarGridSpec(
        num_scalar_prefetch=0,
        grid=(B,),
        in_specs=[
            pl.BlockSpec((None, n_pad, n_pad), lambda b: (b, 0, 0)),      # A_hat
            pl.BlockSpec((None, n_pad, fin_pad), lambda b: (b, 0, 0)),    # X
            pl.BlockSpec((fin_pad, f_pad), lambda b: (0, 0)),             # W1
            pl.BlockSpec((f_pad, f_pad), lambda b: (0, 0)),               # W2
            pl.BlockSpec((f_pad, 2 * f_pad), lambda b: (0, 0)),           # [Wmu|Ws]
            pl.BlockSpec((2, 2 * f_pad), lambda b: (0, 0)),               # biases
            pl.BlockSpec((None, n_pad, 4 * f_pad), lambda b: (b, 0, 0)),  # masks+noise
        ],
        out_specs=pl.BlockSpec((None, n_pad, 3 * f_pad), lambda b: (b, 0, 0)),
    )

    out = pl.pallas_call(
        _gcn_encoder_kernel,
        out_shape=jax.ShapeDtypeStruct((B, n_pad, 3 * f_pad), jnp.float32),
        grid_spec=grid_spec,
        compiler_params=pltpu.CompilerParams(
            dimension_semantics=("parallel",),          # shards graphs across v7x TCs
            vmem_limit_bytes=48 * 1024 * 1024,          # fits v7x 64 MiB VMEM
        ),
    )(a_p, x_p, w1_p, w2_p, wms_p, b_packed, aux)

    mu = out[:, :N, 0:f_hid]
    sigma = out[:, :N, f_pad:f_pad + f_hid]
    z = out[:, :N, 2 * f_pad:2 * f_pad + f_hid]
    return mu, sigma, z


def _make_params(key, f_in, f_hid):
    ks = jax.random.split(key, 4)

    def xavier(k, fan_in, fan_out):
        lim = (6.0 / (fan_in + fan_out)) ** 0.5
        return jax.random.uniform(k, (fan_in, fan_out), jnp.float32, -lim, lim)

    return {
        "w1": xavier(ks[0], f_in, f_hid),   "b1": jnp.zeros((1, f_hid), jnp.float32),
        "w2": xavier(ks[1], f_hid, f_hid),  "b2": jnp.zeros((1, f_hid), jnp.float32),
        "wmu": xavier(ks[2], f_hid, f_hid), "bmu": jnp.zeros((1, f_hid), jnp.float32),
        "ws": xavier(ks[3], f_hid, f_hid),  "bs": jnp.zeros((1, f_hid), jnp.float32),
    }


def _make_graph(n, extra_edge):
    # Undirected ring + self-loops + one graph-specific chord, symmetric normalization.
    a = jnp.eye(n, dtype=jnp.float32)
    idx = jnp.arange(n)
    a = a.at[idx, (idx + 1) % n].set(1.0)
    a = a.at[(idx + 1) % n, idx].set(1.0)
    i, j = extra_edge
    a = a.at[i, j].set(1.0)
    a = a.at[j, i].set(1.0)
    deg = jnp.sum(a, axis=1)
    d_inv_sqrt = 1.0 / jnp.sqrt(deg)
    return a * d_inv_sqrt[:, None] * d_inv_sqrt[None, :]   # D^{-1/2} A D^{-1/2}


if __name__ == "__main__":
    # Small shapes consistent with the module: config.struct = [16, 32];
    # a batch of 4 independent 8-node graphs (batching feeds the "parallel" grid axis).
    B, N, F_IN, F_HID = 4, 8, 16, 32
    P_DROP = 0.5

    key = jax.random.PRNGKey(0)
    k_feat, k_par, k_m2, k_mmu, k_ms, k_noise = jax.random.split(key, 6)

    features = jax.random.normal(k_feat, (B, N, F_IN), jnp.float32)
    a_hat = jnp.stack([_make_graph(N, (0, 2 + g)) for g in range(B)], axis=0)
    params = _make_params(k_par, F_IN, F_HID)

    # Inverted dropout masks (train mode), pre-scaled by 1/(1-p).
    def drop_mask(k):
        keep = jax.random.bernoulli(k, 1.0 - P_DROP, (B, N, F_HID))
        return keep.astype(jnp.float32) / (1.0 - P_DROP)

    drop_masks = {"h2": drop_mask(k_m2), "mu": drop_mask(k_mmu),
                  "sigma": drop_mask(k_ms)}
    noise = jax.random.normal(k_noise, (B, N, F_HID), jnp.float32)

    # mxu_dtype=jnp.bfloat16 is the recommended setting on v6e/v7x for large graphs
    # (f32 accumulation kept); f32 here so the tight reference check below holds.
    mu, sigma, z = gcn_encoder_forward(a_hat, features, params, drop_masks, noise,
                                       mxu_dtype=jnp.float32)
    jax.block_until_ready((mu, sigma, z))

    # Pure-JAX reference check (same association: (A @ h) @ W).
    def gc(h, w, b):
        return jnp.tanh(jnp.matmul(jnp.matmul(a_hat, h), w) + b)

    h1 = gc(features, params["w1"], params["b1"])
    h2 = gc(h1, params["w2"], params["b2"]) * drop_masks["h2"]
    mu_ref = gc(h2, params["wmu"], params["bmu"]) * drop_masks["mu"]
    ls_ref = gc(h2, params["ws"], params["bs"]) * drop_masks["sigma"]
    sigma_ref = jnp.exp(ls_ref)
    z_ref = mu_ref + sigma_ref * noise

    assert jnp.allclose(mu, mu_ref, atol=2e-5), float(jnp.max(jnp.abs(mu - mu_ref)))
    assert jnp.allclose(sigma, sigma_ref, atol=2e-5), float(jnp.max(jnp.abs(sigma - sigma_ref)))
    assert jnp.allclose(z, z_ref, atol=2e-5), float(jnp.max(jnp.abs(z - z_ref)))

    print("KERNEL_OK")
</pallas_src>

<mosaic_0001>
module attributes {stable_mosaic.version = 11 : i64} {
  func.func @_gcn_encoder_kernel(%arg0: i32, %arg1: memref<1x8x8xf32, #tpu.memory_space<vmem>>, %arg2: memref<1x8x128xf32, #tpu.memory_space<vmem>>, %arg3: memref<128x128xf32, #tpu.memory_space<vmem>>, %arg4: memref<128x128xf32, #tpu.memory_space<vmem>>, %arg5: memref<128x256xf32, #tpu.memory_space<vmem>>, %arg6: memref<2x256xf32, #tpu.memory_space<vmem>>, %arg7: memref<1x8x512xf32, #tpu.memory_space<vmem>>, %arg8: memref<1x8x384xf32, #tpu.memory_space<vmem>>) attributes {dimension_semantics = [#tpu.dimension_semantics<parallel>], iteration_bounds = array<i64: 4>, scalar_prefetch = 0 : i64, scratch_operands = 0 : i64, tpu.core_type = #tpu.core_type<tc>, window_params = [{transform_indices = @transform_0, window_bounds = array<i64: 1, 8, 8>}, {transform_indices = @transform_1, window_bounds = array<i64: 1, 8, 128>}, {pipeline_mode = #tpu.pipeline_mode<synchronous>, transform_indices = @transform_2, window_bounds = array<i64: 128, 128>}, {pipeline_mode = #tpu.pipeline_mode<synchronous>, transform_indices = @transform_3, window_bounds = array<i64: 128, 128>}, {pipeline_mode = #tpu.pipeline_mode<synchronous>, transform_indices = @transform_4, window_bounds = array<i64: 128, 256>}, {pipeline_mode = #tpu.pipeline_mode<synchronous>, transform_indices = @transform_5, window_bounds = array<i64: 2, 256>}, {transform_indices = @transform_6, window_bounds = array<i64: 1, 8, 512>}, {transform_indices = @transform_7, window_bounds = array<i64: 1, 8, 384>}]} {
    %c0 = arith.constant 0 : index
    %c0_0 = arith.constant 0 : index
    %c0_1 = arith.constant 0 : index
    %0 = vector.load %arg1[%c0, %c0_0, %c0_1] : memref<1x8x8xf32, #tpu.memory_space<vmem>>, vector<1x8x8xf32>
    %1 = vector.shape_cast %0 : vector<1x8x8xf32> to vector<8x8xf32>
    %c0_2 = arith.constant 0 : index
    %c0_3 = arith.constant 0 : index
    %c0_4 = arith.constant 0 : index
    %2 = vector.load %arg2[%c0_2, %c0_3, %c0_4] : memref<1x8x128xf32, #tpu.memory_space<vmem>>, vector<1x8x128xf32>
    %3 = vector.shape_cast %2 : vector<1x8x128xf32> to vector<8x128xf32>
    %c0_5 = arith.constant 0 : index
    %c0_6 = arith.constant 0 : index
    %c0_7 = arith.constant 0 : index
    %4 = vector.load %arg7[%c0_5, %c0_6, %c0_7] : memref<1x8x512xf32, #tpu.memory_space<vmem>>, vector<1x8x512xf32>
    %5 = vector.shape_cast %4 : vector<1x8x512xf32> to vector<8x512xf32>
    %c0_8 = arith.constant 0 : index
    %c0_9 = arith.constant 0 : index
    %6 = vector.load %arg6[%c0_8, %c0_9] : memref<2x256xf32, #tpu.memory_space<vmem>>, vector<1x128xf32>
    %c0_10 = arith.constant 0 : index
    %c128 = arith.constant 128 : index
    %7 = vector.load %arg6[%c0_10, %c128] : memref<2x256xf32, #tpu.memory_space<vmem>>, vector<1x128xf32>
    %c1 = arith.constant 1 : index
    %c0_11 = arith.constant 0 : index
    %8 = vector.load %arg6[%c1, %c0_11] : memref<2x256xf32, #tpu.memory_space<vmem>>, vector<1x256xf32>
    %c0_12 = arith.constant 0 : index
    %c0_13 = arith.constant 0 : index
    %9 = vector.load %arg3[%c0_12, %c0_13] : memref<128x128xf32, #tpu.memory_space<vmem>>, vector<128x128xf32>
    %cst = arith.constant dense<0.000000e+00> : vector<8x128xf32>
    %10 = tpu.matmul %1, %3, %cst {dimension_numbers = #tpu.dot_dimension_numbers<[1], [0], [0], [1], [0, 0, 1, 1], [], []>} : vector<8x8xf32>, vector<8x128xf32>, vector<8x128xf32> -> vector<8x128xf32>
    %cst_14 = arith.constant dense<0.000000e+00> : vector<8x128xf32>
    %11 = tpu.matmul %10, %9, %cst_14 {dimension_numbers = #tpu.dot_dimension_numbers<[1], [0], [0], [1], [0, 0, 1, 1], [], []>} : vector<8x128xf32>, vector<128x128xf32>, vector<8x128xf32> -> vector<8x128xf32>
    %12 = vector.broadcast %6 : vector<1x128xf32> to vector<8x128xf32>
    %13 = arith.addf %11, %12 : vector<8x128xf32>
    %14 = math.tanh %13 : vector<8x128xf32>
    %c0_15 = arith.constant 0 : index
    %c0_16 = arith.constant 0 : index
    %15 = vector.load %arg4[%c0_15, %c0_16] : memref<128x128xf32, #tpu.memory_space<vmem>>, vector<128x128xf32>
    %cst_17 = arith.constant dense<0.000000e+00> : vector<8x128xf32>
    %16 = tpu.matmul %1, %14, %cst_17 {dimension_numbers = #tpu.dot_dimension_numbers<[1], [0], [0], [1], [0, 0, 1, 1], [], []>} : vector<8x8xf32>, vector<8x128xf32>, vector<8x128xf32> -> vector<8x128xf32>
    %cst_18 = arith.constant dense<0.000000e+00> : vector<8x128xf32>
    %17 = tpu.matmul %16, %15, %cst_18 {dimension_numbers = #tpu.dot_dimension_numbers<[1], [0], [0], [1], [0, 0, 1, 1], [], []>} : vector<8x128xf32>, vector<128x128xf32>, vector<8x128xf32> -> vector<8x128xf32>
    %18 = vector.broadcast %7 : vector<1x128xf32> to vector<8x128xf32>
    %19 = arith.addf %17, %18 : vector<8x128xf32>
    %20 = math.tanh %19 : vector<8x128xf32>
    %21 = vector.extract_strided_slice %5 {offsets = [0, 0], sizes = [8, 128], strides = [1, 1]} : vector<8x512xf32> to vector<8x128xf32>
    %22 = arith.mulf %20, %21 : vector<8x128xf32>
    %c0_19 = arith.constant 0 : index
    %c0_20 = arith.constant 0 : index
    %23 = vector.load %arg5[%c0_19, %c0_20] : memref<128x256xf32, #tpu.memory_space<vmem>>, vector<128x256xf32>
    %cst_21 = arith.constant dense<0.000000e+00> : vector<8x128xf32>
    %24 = tpu.matmul %1, %22, %cst_21 {dimension_numbers = #tpu.dot_dimension_numbers<[1], [0], [0], [1], [0, 0, 1, 1], [], []>} : vector<8x8xf32>, vector<8x128xf32>, vector<8x128xf32> -> vector<8x128xf32>
    %cst_22 = arith.constant dense<0.000000e+00> : vector<8x256xf32>
    %25 = tpu.matmul %24, %23, %cst_22 {dimension_numbers = #tpu.dot_dimension_numbers<[1], [0], [0], [1], [0, 0, 1, 1], [], []>} : vector<8x128xf32>, vector<128x256xf32>, vector<8x256xf32> -> vector<8x256xf32>
    %26 = vector.broadcast %8 : vector<1x256xf32> to vector<8x256xf32>
    %27 = arith.addf %25, %26 : vector<8x256xf32>
    %28 = math.tanh %27 : vector<8x256xf32>
    %29 = vector.extract_strided_slice %28 {offsets = [0, 0], sizes = [8, 128], strides = [1, 1]} : vector<8x256xf32> to vector<8x128xf32>
    %30 = vector.extract_strided_slice %5 {offsets = [0, 128], sizes = [8, 128], strides = [1, 1]} : vector<8x512xf32> to vector<8x128xf32>
    %31 = arith.mulf %29, %30 : vector<8x128xf32>
    %32 = vector.extract_strided_slice %28 {offsets = [0, 128], sizes = [8, 128], strides = [1, 1]} : vector<8x256xf32> to vector<8x128xf32>
    %33 = vector.extract_strided_slice %5 {offsets = [0, 256], sizes = [8, 128], strides = [1, 1]} : vector<8x512xf32> to vector<8x128xf32>
    %34 = arith.mulf %32, %33 : vector<8x128xf32>
    %35 = math.exp %34 : vector<8x128xf32>
    %36 = vector.extract_strided_slice %5 {offsets = [0, 384], sizes = [8, 128], strides = [1, 1]} : vector<8x512xf32> to vector<8x128xf32>
    %37 = arith.mulf %35, %36 : vector<8x128xf32>
    %38 = arith.addf %31, %37 : vector<8x128xf32>
    %c0_23 = arith.constant 0 : index
    %c0_24 = arith.constant 0 : index
    %c0_25 = arith.constant 0 : index
    %39 = vector.load %arg8[%c0_23, %c0_24, %c0_25] : memref<1x8x384xf32, #tpu.memory_space<vmem>>, vector<1x8x128xf32>
    %40 = vector.shape_cast %39 : vector<1x8x128xf32> to vector<8x128xf32>
    %41 = vector.shape_cast %31 : vector<8x128xf32> to vector<1x8x128xf32>
    tpu.vector_store %arg8[%c0_23, %c0_24, %c0_25], %41 {strides = array<i32>} : memref<1x8x384xf32, #tpu.memory_space<vmem>>, vector<1x8x128xf32>,
    %c0_26 = arith.constant 0 : index
    %c0_27 = arith.constant 0 : index
    %c128_28 = arith.constant 128 : index
    %42 = vector.load %arg8[%c0_26, %c0_27, %c128_28] : memref<1x8x384xf32, #tpu.memory_space<vmem>>, vector<1x8x128xf32>
    %43 = vector.shape_cast %42 : vector<1x8x128xf32> to vector<8x128xf32>
    %44 = vector.shape_cast %35 : vector<8x128xf32> to vector<1x8x128xf32>
    tpu.vector_store %arg8[%c0_26, %c0_27, %c128_28], %44 {strides = array<i32>} : memref<1x8x384xf32, #tpu.memory_space<vmem>>, vector<1x8x128xf32>,
    %c0_29 = arith.constant 0 : index
    %c0_30 = arith.constant 0 : index
    %c256 = arith.constant 256 : index
    %45 = vector.load %arg8[%c0_29, %c0_30, %c256] : memref<1x8x384xf32, #tpu.memory_space<vmem>>, vector<1x8x128xf32>
    %46 = vector.shape_cast %45 : vector<1x8x128xf32> to vector<8x128xf32>
    %47 = vector.shape_cast %38 : vector<8x128xf32> to vector<1x8x128xf32>
    tpu.vector_store %arg8[%c0_29, %c0_30, %c256], %47 {strides = array<i32>} : memref<1x8x384xf32, #tpu.memory_space<vmem>>, vector<1x8x128xf32>,
    return
  }
  func.func @transform_0(%arg0: i32) -> (i32, i32, i32) {
    %c0_i32 = arith.constant 0 : i32
    %c0_i32_0 = arith.constant 0 : i32
    %c0_i32_1 = arith.constant 0 : i32
    return %arg0, %c0_i32, %c0_i32_0 : i32, i32, i32
  }
  func.func @transform_1(%arg0: i32) -> (i32, i32, i32) {
    %c0_i32 = arith.constant 0 : i32
    %c0_i32_0 = arith.constant 0 : i32
    %c0_i32_1 = arith.constant 0 : i32
    return %arg0, %c0_i32, %c0_i32_0 : i32, i32, i32
  }
  func.func @transform_2(%arg0: i32) -> (i32, i32) {
    %c0_i32 = arith.constant 0 : i32
    %c0_i32_0 = arith.constant 0 : i32
    %c0_i32_1 = arith.constant 0 : i32
    return %c0_i32, %c0_i32_0 : i32, i32
  }
  func.func @transform_3(%arg0: i32) -> (i32, i32) {
    %c0_i32 = arith.constant 0 : i32
    %c0_i32_0 = arith.constant 0 : i32
    %c0_i32_1 = arith.constant 0 : i32
    return %c0_i32, %c0_i32_0 : i32, i32
  }
  func.func @transform_4(%arg0: i32) -> (i32, i32) {
    %c0_i32 = arith.constant 0 : i32
    %c0_i32_0 = arith.constant 0 : i32
    %c0_i32_1 = arith.constant 0 : i32
    return %c0_i32, %c0_i32_0 : i32, i32
  }
  func.func @transform_5(%arg0: i32) -> (i32, i32) {
    %c0_i32 = arith.constant 0 : i32
    %c0_i32_0 = arith.constant 0 : i32
    %c0_i32_1 = arith.constant 0 : i32
    return %c0_i32, %c0_i32_0 : i32, i32
  }
  func.func @transform_6(%arg0: i32) -> (i32, i32, i32) {
    %c0_i32 = arith.constant 0 : i32
    %c0_i32_0 = arith.constant 0 : i32
    %c0_i32_1 = arith.constant 0 : i32
    return %arg0, %c0_i32, %c0_i32_0 : i32, i32, i32
  }
  func.func @transform_7(%arg0: i32) -> (i32, i32, i32) {
    %c0_i32 = arith.constant 0 : i32
    %c0_i32_0 = arith.constant 0 : i32
    %c0_i32_1 = arith.constant 0 : i32
    return %arg0, %c0_i32, %c0_i32_0 : i32, i32, i32
  }
}

</mosaic_0001>

<llo_original>
// kernel: tpu_custom_call.1
$region0: #{tpu_custom_call.1}
  #allocation0 [shape = 'u32[]', space=smem, size = 0x4, offset = 0x4, fixed_abs, tag = 'smem constant byte address 0x4 - core index']
  #allocation1 [shape = 'u32[144,128]{1,0:T(1,128)}', space=vmem, size = 0x12000, scoped, tag = 'internal scratch']
  %s0 = inlined_call_operand.hbm [shape: f32[4,8,8], index: 0, kind: input, shape index: {}]
  %s1 = inlined_call_operand.hbm [shape: f32[4,8,128], index: 1, kind: input, shape index: {}]
  %s2 = inlined_call_operand.hbm [shape: f32[128,128], index: 2, kind: input, shape index: {}]
  %s3 = inlined_call_operand.hbm [shape: f32[128,128], index: 3, kind: input, shape index: {}]
  %s4 = inlined_call_operand.hbm [shape: f32[128,256], index: 4, kind: input, shape index: {}]
  %s5 = inlined_call_operand.vmem [shape: f32[2,256], index: 5, kind: input, shape index: {}]
  %s6 = inlined_call_operand.hbm [shape: f32[4,8,512], index: 6, kind: input, shape index: {}]
  %s7 = inlined_call_operand.hbm [shape: f32[4,8,384], index: 7, kind: output, shape index: {}]
  %s8 = sld [smem:[#allocation0]]
  $region85: #{tpu_custom_call.1} parent=0
    _
  %s10 = ssub.s32 1, %s8
  %s11 = scalar_select 0, %s10, %s8
  $region1: #{tpu_custom_call.1} parent=0
    #allocation2 [shape = 'u8[8192]{0}', space=vmem, size = 0x2000, scoped, tag = 'input window, operand 0']
    #allocation3 [shape = 's32[2]{0}', space=sflag, size = 0x8, scoped, tag = 'scoped memory for tpu_custom_call.1']
    #allocation4 [shape = 's32[2]{0}', space=sflag, size = 0x8, scoped, tag = 'scoped memory for tpu_custom_call.1']
    #allocation5 [shape = 'u8[8192]{0}', space=vmem, size = 0x2000, scoped, tag = 'input window, operand 1']
    #allocation6 [shape = 's32[2]{0}', space=sflag, size = 0x8, scoped, tag = 'scoped memory for tpu_custom_call.1']
    #allocation7 [shape = 'u8[65536]{0}', space=vmem, size = 0x10000, scoped, tag = 'input window, operand 2, single buffered']
    #allocation8 [shape = 'u8[65536]{0}', space=vmem, size = 0x10000, scoped, tag = 'input window, operand 3, single buffered']
    #allocation9 [shape = 's32[1]{0}', space=sflag, size = 0x4, scoped, tag = 'scoped memory for tpu_custom_call.1']
    #allocation10 [shape = 'u8[131072]{0}', space=vmem, size = 0x20000, scoped, tag = 'input window, operand 4, single buffered']
    #allocation11 [shape = 'u8[32768]{0}', space=vmem, size = 0x8000, scoped, tag = 'input window, operand 6']
    #allocation12 [shape = 's32[2]{0}', space=sflag, size = 0x8, scoped, tag = 'scoped memory for tpu_custom_call.1']
    #allocation13 [shape = 'u8[24576]{0}', space=vmem, size = 0x6000, scoped, tag = 'output window, operand 0']
    %12 = vsyncpa [#allocation3], 0
    %s13 = scalar_lea.sflag [#allocation3], 1
    %14 = vsyncpa %s13, 0
    %15 = vsyncpa [#allocation6], 0
    %s16 = scalar_lea.sflag [#allocation6], 1
    %17 = vsyncpa %s16, 0
    %18 = vsyncpa [#allocation9], 0
    %19 = vsyncpa [#allocation12], 0
    %s20 = scalar_lea.sflag [#allocation12], 1
    %21 = vsyncpa %s20, 0
    %22 = vsyncpa [#allocation4], 0
    %s23 = scalar_lea.sflag [#allocation4], 1
    %24 = vsyncpa %s23, 0
    loop: start=0, step=1, limit=6
    $region2: #{tpu_custom_call.1} parent=1 // loop_pre_header
      _
    $region3: #{tpu_custom_call.1} parent=1 // loop_header
      %s26 = sphi 0, %s30
      %p27 = scmp.ge.s32.totalorder %s26, 6
      %s36 = sphi 0, %s38
      %s39 = sphi 0, %s36
      %s40 = sphi 0, %s39
      %s56 = sphi 0, %s40
      %s62 = sphi 0, %s64
      %s65 = sphi 0, %s62
      %s66 = sphi 0, %s65
      %s82 = sphi 0, %s66
      %s86 = sphi 0, %s86
      %s88 = sphi 0, %s86
      %s89 = sphi 0, %s88
      %s103 = sphi 0, %s89
      %s107 = sphi 0, %s107
      %s109 = sphi 0, %s107
      %s110 = sphi 0, %s109
      %s124 = sphi 0, %s110
      %s128 = sphi 0, %s128
      %s130 = sphi 0, %s128
      %s131 = sphi 0, %s130
      %s145 = sphi 0, %s131
      %s149 = sphi 0, %s149
      %s151 = sphi 0, %s149
      %s152 = sphi 0, %s151
      %s166 = sphi 0, %s152
      %s172 = sphi 0, %s174
      %s175 = sphi 0, %s172
      %s176 = sphi 0, %s175
      %s192 = sphi 0, %s176
      %s198 = sphi 0, %s200
      %s201 = sphi 0, %s198
      %s202 = sphi 0, %s201
      %s218 = sphi 0, %s202
    $region4: #{tpu_custom_call.1} parent=1 // loop_header_branch
      %29 = sbr.rel (%p27) target = $region8
    $region5: #{tpu_custom_call.1} parent=1 // loop_body
      %s31 = ssub.s32 %s26, 1
      %s32 = ssub.s32 %s26, 2
      %s33 = sadd.s32 %s26, 1
      %s34 = ssub.s32 %s26, %s33
      %p35 = scmp.eq.s32.totalorder %s34, 0
      %s37 = sadd.s32 %s36, 1
      %s38 = scalar_select %p35, %s36, %s37
      %p41 = pneg %p35
      %p42 = scmp.eq.s32.totalorder %s26, 3
      %p43 = por %p41, %p42
      %p44 = scmp.ne.s32.totalorder %s36, %s39
      %p45 = scmp.eq.s32.totalorder %s26, 0
      %p46 = por %p44, %p45
      %p47 = scmp.ne.s32.totalorder %s36, %s39
      %p48 = scmp.eq.s32.totalorder %s31, 3
      %p49 = por %p47, %p48
      %p50 = scmp.ne.s32.totalorder %s39, %s40
      %p51 = scmp.eq.s32.totalorder %s31, 0
      %p52 = por %p50, %p51
      %p53 = scmp.ne.s32.totalorder %s39, %s40
      %p54 = scmp.eq.s32.totalorder %s32, 3
      %p55 = por %p53, %p54
      %p57 = scmp.ne.s32.totalorder %s40, %s56
      %p58 = scmp.eq.s32.totalorder %s32, 0
      %p59 = por %p57, %p58
      %s60 = ssub.s32 %s26, %s33
      %p61 = scmp.eq.s32.totalorder %s60, 0
      %s63 = sadd.s32 %s62, 1
      %s64 = scalar_select %p61, %s62, %s63
      %p67 = pneg %p61
      %p68 = scmp.eq.s32.totalorder %s26, 3
      %p69 = por %p67, %p68
      %p70 = scmp.ne.s32.totalorder %s62, %s65
      %p71 = scmp.eq.s32.totalorder %s26, 0
      %p72 = por %p70, %p71
      %p73 = scmp.ne.s32.totalorder %s62, %s65
      %p74 = scmp.eq.s32.totalorder %s31, 3
      %p75 = por %p73, %p74
      %p76 = scmp.ne.s32.totalorder %s65, %s66
      %p77 = scmp.eq.s32.totalorder %s31, 0
      %p78 = por %p76, %p77
      %p79 = scmp.ne.s32.totalorder %s65, %s66
      %p80 = scmp.eq.s32.totalorder %s32, 3
      %p81 = por %p79, %p80
      %p83 = scmp.ne.s32.totalorder %s66, %s82
      %p84 = scmp.eq.s32.totalorder %s32, 0
      %p85 = por %p83, %p84
      %s87 = sadd.s32 %s86, 1
      %p90 = scmp.eq.s32.totalorder %s26, 3
      %p91 = scmp.ne.s32.totalorder %s86, %s88
      %p92 = scmp.eq.s32.totalorder %s26, 0
      %p93 = por %p91, %p92
      %p94 = scmp.ne.s32.totalorder %s86, %s88
      %p95 = scmp.eq.s32.totalorder %s31, 3
      %p96 = por %p94, %p95
      %p97 = scmp.ne.s32.totalorder %s88, %s89
      %p98 = scmp.eq.s32.totalorder %s31, 0
      %p99 = por %p97, %p98
      %p100 = scmp.ne.s32.totalorder %s88, %s89
      %p101 = scmp.eq.s32.totalorder %s32, 3
      %p102 = por %p100, %p101
      %p104 = scmp.ne.s32.totalorder %s89, %s103
      %p105 = scmp.eq.s32.totalorder %s32, 0
      %p106 = por %p104, %p105
      %s108 = sadd.s32 %s107, 1
      %p111 = scmp.eq.s32.totalorder %s26, 3
      %p112 = scmp.ne.s32.totalorder %s107, %s109
      %p113 = scmp.eq.s32.totalorder %s26, 0
      %p114 = por %p112, %p113
      %p115 = scmp.ne.s32.totalorder %s107, %s109
      %p116 = scmp.eq.s32.totalorder %s31, 3
      %p117 = por %p115, %p116
      %p118 = scmp.ne.s32.totalorder %s109, %s110
      %p119 = scmp.eq.s32.totalorder %s31, 0
      %p120 = por %p118, %p119
      %p121 = scmp.ne.s32.totalorder %s109, %s110
      %p122 = scmp.eq.s32.totalorder %s32, 3
      %p123 = por %p121, %p122
      %p125 = scmp.ne.s32.totalorder %s110, %s124
      %p126 = scmp.eq.s32.totalorder %s32, 0
      %p127 = por %p125, %p126
      %s129 = sadd.s32 %s128, 1
      %p132 = scmp.eq.s32.totalorder %s26, 3
      %p133 = scmp.ne.s32.totalorder %s128, %s130
      %p134 = scmp.eq.s32.totalorder %s26, 0
      %p135 = por %p133, %p134
      %p136 = scmp.ne.s32.totalorder %s128, %s130
      %p137 = scmp.eq.s32.totalorder %s31, 3
      %p138 = por %p136, %p137
      %p139 = scmp.ne.s32.totalorder %s130, %s131
      %p140 = scmp.eq.s32.totalorder %s31, 0
      %p141 = por %p139, %p140
      %p142 = scmp.ne.s32.totalorder %s130, %s131
      %p143 = scmp.eq.s32.totalorder %s32, 3
      %p144 = por %p142, %p143
      %p146 = scmp.ne.s32.totalorder %s131, %s145
      %p147 = scmp.eq.s32.totalorder %s32, 0
      %p148 = por %p146, %p147
      %s150 = sadd.s32 %s149, 1
      %p153 = scmp.eq.s32.totalorder %s26, 3
      %p154 = scmp.ne.s32.totalorder %s149, %s151
      %p155 = scmp.eq.s32.totalorder %s26, 0
      %p156 = por %p154, %p155
      %p157 = scmp.ne.s32.totalorder %s149, %s151
      %p158 = scmp.eq.s32.totalorder %s31, 3
      %p159 = por %p157, %p158
      %p160 = scmp.ne.s32.totalorder %s151, %s152
      %p161 = scmp.eq.s32.totalorder %s31, 0
      %p162 = por %p160, %p161
      %p163 = scmp.ne.s32.totalorder %s151, %s152
      %p164 = scmp.eq.s32.totalorder %s32, 3
      %p165 = por %p163, %p164
      %p167 = scmp.ne.s32.totalorder %s152, %s166
      %p168 = scmp.eq.s32.totalorder %s32, 0
      %p169 = por %p167, %p168
      %s170 = ssub.s32 %s26, %s33
      %p171 = scmp.eq.s32.totalorder %s170, 0
      %s173 = sadd.s32 %s172, 1
      %s174 = scalar_select %p171, %s172, %s173
      %p177 = pneg %p171
      %p178 = scmp.eq.s32.totalorder %s26, 3
      %p179 = por %p177, %p178
      %p180 = scmp.ne.s32.totalorder %s172, %s175
      %p181 = scmp.eq.s32.totalorder %s26, 0
      %p182 = por %p180, %p181
      %p183 = scmp.ne.s32.totalorder %s172, %s175
      %p184 = scmp.eq.s32.totalorder %s31, 3
      %p185 = por %p183, %p184
      %p186 = scmp.ne.s32.totalorder %s175, %s176
      %p187 = scmp.eq.s32.totalorder %s31, 0
      %p188 = por %p186, %p187
      %p189 = scmp.ne.s32.totalorder %s175, %s176
      %p190 = scmp.eq.s32.totalorder %s32, 3
      %p191 = por %p189, %p190
      %p193 = scmp.ne.s32.totalorder %s176, %s192
      %p194 = scmp.eq.s32.totalorder %s32, 0
      %p195 = por %p193, %p194
      %s196 = ssub.s32 %s26, %s33
      %p197 = scmp.eq.s32.totalorder %s196, 0
      %s199 = sadd.s32 %s198, 1
      %s200 = scalar_select %p197, %s198, %s199
      %p203 = pneg %p197
      %p204 = scmp.eq.s32.totalorder %s26, 3
      %p205 = por %p203, %p204
      %p206 = scmp.ne.s32.totalorder %s198, %s201
      %p207 = scmp.eq.s32.totalorder %s26, 0
      %p208 = por %p206, %p207
      %p209 = scmp.ne.s32.totalorder %s198, %s201
      %p210 = scmp.eq.s32.totalorder %s31, 3
      %p211 = por %p209, %p210
      %p212 = scmp.ne.s32.totalorder %s201, %s202
      %p213 = scmp.eq.s32.totalorder %s31, 0
      %p214 = por %p212, %p213
      %p215 = scmp.ne.s32.totalorder %s201, %s202
      %p216 = scmp.eq.s32.totalorder %s32, 3
      %p217 = por %p215, %p216
      %p219 = scmp.ne.s32.totalorder %s202, %s218
      %p220 = scmp.eq.s32.totalorder %s32, 0
      %p221 = por %p219, %p220
      %p222 = scmp.le.s32.totalorder 1, %s26
      %p223 = scmp.lt.s32.totalorder %s26, 5
      %p224 = pnand %p222, %p223
      %p225 = pneg %p224
      // Predicated region
      $region9: #{tpu_custom_call.1} parent=5 // pred_check
        _
      $region10: #{tpu_custom_call.1} parent=5 // pred_check_branch
        %227 = sbr.rel (%p224) target = $region12
      $region11: #{tpu_custom_call.1} parent=5 // pred_region
        %s228 = ssub.s32 %s26, 1
        // Predicated region
        $region13: #{tpu_custom_call.1} parent=11 // pred_check
          %p229 = pneg %p99
        $region14: #{tpu_custom_call.1} parent=11 // pred_check_branch
          %231 = sbr.rel (%p229) target = $region16
        $region15: #{tpu_custom_call.1} parent=11 // pred_region
          %s233 = ssub.s32 2048, 2048
          %234 = vsyncadd [#allocation6], %s233
          %s235 = sshll.u32 [#allocation7], 4
          %s236 = int_to_ptr.vmem [resolvable:$true] %s235
          %241 = dma.hbm_to_vmem [thread:$0]  %s2, 2048, %s236, [#allocation6], 128, 128, 8
        $region16: #{tpu_custom_call.1} parent=11 // pred_fallthru
          _
        // Predicated region
        $region17: #{tpu_custom_call.1} parent=11 // pred_check
          %p242 = pneg %p120
        $region18: #{tpu_custom_call.1} parent=11 // pred_check_branch
          %244 = sbr.rel (%p242) target = $region20
        $region19: #{tpu_custom_call.1} parent=11 // pred_region
          %s246 = ssub.s32 2048, 2048
          %247 = vsyncadd [#allocation9], %s246
          %s248 = sshll.u32 [#allocation8], 4
          %s249 = int_to_ptr.vmem [resolvable:$true] %s248
          %254 = dma.hbm_to_vmem [thread:$0]  %s3, 2048, %s249, [#allocation9], 128, 128, 8
        $region20: #{tpu_custom_call.1} parent=11 // pred_fallthru
          _
        // Predicated region
        $region21: #{tpu_custom_call.1} parent=11 // pred_check
          %p255 = pneg %p141
        $region22: #{tpu_custom_call.1} parent=11 // pred_check_branch
          %257 = sbr.rel (%p255) target = $region24
        $region23: #{tpu_custom_call.1} parent=11 // pred_region
          %s259 = ssub.s32 4096, 4096
          %260 = vsyncadd [#allocation9], %s259
          %s261 = sshll.u32 [#allocation10], 4
          %s262 = int_to_ptr.vmem [resolvable:$true] %s261
          %267 = dma.hbm_to_vmem [thread:$0]  %s4, 4096, %s262, [#allocation9], 256, 256, 16
        $region24: #{tpu_custom_call.1} parent=11 // pred_fallthru
          _
        // Predicated region
        $region25: #{tpu_custom_call.1} parent=11 // pred_check
          %p268 = pneg %p162
        $region26: #{tpu_custom_call.1} parent=11 // pred_check_branch
          %270 = sbr.rel (%p268) target = $region28
        $region27: #{tpu_custom_call.1} parent=11 // pred_region
          _
        $region28: #{tpu_custom_call.1} parent=11 // pred_fallthru
          _
      $region12: #{tpu_custom_call.1} parent=5 // pred_fallthru
        _
      %p271 = scmp.lt.s32.totalorder %s26, 4
      // Predicated region
      $region29: #{tpu_custom_call.1} parent=5 // pred_check
        %p272 = pneg %p271
      $region30: #{tpu_custom_call.1} parent=5 // pred_check_branch
        %274 = sbr.rel (%p272) target = $region32
      $region31: #{tpu_custom_call.1} parent=5 // pred_region
        // Predicated region
        $region33: #{tpu_custom_call.1} parent=31 // pred_check
          %p275 = pneg %p46
        $region34: #{tpu_custom_call.1} parent=31 // pred_check_branch
          %277 = sbr.rel (%p275) target = $region36
        $region35: #{tpu_custom_call.1} parent=31 // pred_region
          %s278 = sand.u32 %s36, 1
          %s279 = scalar_lea.sflag [#allocation3], %s278
          %s280 = sand.u32 %s36, 1
          %s281 = smul.addr %s280, 8
          %s282 = scalar_lea.vmem [#allocation2], %s281
          %s284 = ssub.s32 128, 128
          %285 = vsyncadd %s279, %s284
          %s286 = smul.addr %s26, 128
          %s287 = scalar_lea.hbm %s0, %s286
          %s289 = sshll.u32 %s282, 4
          %s290 = int_to_ptr.vmem [resolvable:$true] %s289
          %292 = dma.hbm_to_vmem [thread:$0]  %s287, 128, %s290, %s279
        $region36: #{tpu_custom_call.1} parent=31 // pred_fallthru
          _
        // Predicated region
        $region37: #{tpu_custom_call.1} parent=31 // pred_check
          %p293 = pneg %p72
        $region38: #{tpu_custom_call.1} parent=31 // pred_check_branch
          %295 = sbr.rel (%p293) target = $region40
        $region39: #{tpu_custom_call.1} parent=31 // pred_region
          %s296 = sand.u32 %s26, 1
          %s297 = scalar_lea.sflag [#allocation6], %s296
          %s298 = sand.u32 %s62, 1
          %s299 = smul.addr %s298, 8
          %s300 = scalar_lea.vmem [#allocation5], %s299
          %s302 = ssub.s32 128, 128
          %303 = vsyncadd %s297, %s302
          %s304 = smul.addr %s26, 128
          %s305 = scalar_lea.hbm %s1, %s304
          %s307 = sshll.u32 %s300, 4
          %s308 = int_to_ptr.vmem [resolvable:$true] %s307
          %310 = dma.hbm_to_vmem [thread:$0]  %s305, 128, %s308, %s297
        $region40: #{tpu_custom_call.1} parent=31 // pred_fallthru
          _
        // Predicated region
        $region41: #{tpu_custom_call.1} parent=31 // pred_check
          %p311 = pneg %p182
        $region42: #{tpu_custom_call.1} parent=31 // pred_check_branch
          %313 = sbr.rel (%p311) target = $region44
        $region43: #{tpu_custom_call.1} parent=31 // pred_region
          %s314 = sand.u32 %s172, 1
          %s315 = scalar_lea.sflag [#allocation12], %s314
          %s316 = sand.u32 %s172, 1
          %s317 = smul.addr %s316, 32
          %s318 = scalar_lea.vmem [#allocation11], %s317
          %s320 = ssub.s32 512, 512
          %321 = vsyncadd %s315, %s320
          %s322 = smul.addr %s26, 4
          %s323 = smul.addr %s322, 128
          %s324 = scalar_lea.hbm %s6, %s323
          %s326 = sshll.u32 %s318, 4
          %s327 = int_to_ptr.vmem [resolvable:$true] %s326
          %329 = dma.hbm_to_vmem [thread:$0]  %s324, 512, %s327, %s315
        $region44: #{tpu_custom_call.1} parent=31 // pred_fallthru
          _
      $region32: #{tpu_custom_call.1} parent=5 // pred_fallthru
        _
      %p330 = scmp.le.s32.totalorder 1, %s26
      %p331 = scmp.lt.s32.totalorder %s26, 5
      %p332 = pnand %p330, %p331
      %p333 = pneg %p332
      // Predicated region
      $region45: #{tpu_custom_call.1} parent=5 // pred_check
        _
      $region46: #{tpu_custom_call.1} parent=5 // pred_check_branch
        %335 = sbr.rel (%p332) target = $region48
      $region47: #{tpu_custom_call.1} parent=5 // pred_region
        %s336 = ssub.s32 %s26, 1
        %s337 = sand.u32 %s39, 1
        %s338 = scalar_lea.sflag [#allocation3], %s337
        %s339 = sand.u32 %s39, 1
        %s340 = smul.addr %s339, 8
        %s341 = scalar_lea.vmem [#allocation2], %s340
        // Predicated region
        $region49: #{tpu_custom_call.1} parent=47 // pred_check
          %p342 = pneg %p52
        $region50: #{tpu_custom_call.1} parent=47 // pred_check_branch
          %344 = sbr.rel (%p342) target = $region52
        $region51: #{tpu_custom_call.1} parent=47 // pred_region
          %345 = dma.done %s338, 128
        $region52: #{tpu_custom_call.1} parent=47 // pred_fallthru
          _
        %s346 = sand.u32 %s31, 1
        %s347 = scalar_lea.sflag [#allocation6], %s346
        %s348 = sand.u32 %s65, 1
        %s349 = smul.addr %s348, 8
        %s350 = scalar_lea.vmem [#allocation5], %s349
        // Predicated region
        $region53: #{tpu_custom_call.1} parent=47 // pred_check
          %p351 = pneg %p78
        $region54: #{tpu_custom_call.1} parent=47 // pred_check_branch
          %353 = sbr.rel (%p351) target = $region56
        $region55: #{tpu_custom_call.1} parent=47 // pred_region
          %354 = dma.done %s347, 128
        $region56: #{tpu_custom_call.1} parent=47 // pred_fallthru
          _
        // Predicated region
        $region57: #{tpu_custom_call.1} parent=47 // pred_check
          %p355 = pneg %p99
        $region58: #{tpu_custom_call.1} parent=47 // pred_check_branch
          %357 = sbr.rel (%p355) target = $region60
        $region59: #{tpu_custom_call.1} parent=47 // pred_region
          %358 = dma.done [#allocation6], 2048
        $region60: #{tpu_custom_call.1} parent=47 // pred_fallthru
          _
        // Predicated region
        $region61: #{tpu_custom_call.1} parent=47 // pred_check
          %p359 = pneg %p120
        $region62: #{tpu_custom_call.1} parent=47 // pred_check_branch
          %361 = sbr.rel (%p359) target = $region64
        $region63: #{tpu_custom_call.1} parent=47 // pred_region
          %362 = dma.done [#allocation9], 2048
        $region64: #{tpu_custom_call.1} parent=47 // pred_fallthru
          _
        // Predicated region
        $region65: #{tpu_custom_call.1} parent=47 // pred_check
          %p363 = pneg %p141
        $region66: #{tpu_custom_call.1} parent=47 // pred_check_branch
          %365 = sbr.rel (%p363) target = $region68
        $region67: #{tpu_custom_call.1} parent=47 // pred_region
          %366 = dma.done [#allocation9], 4096
        $region68: #{tpu_custom_call.1} parent=47 // pred_fallthru
          _
        %s367 = sand.u32 %s175, 1
        %s368 = scalar_lea.sflag [#allocation12], %s367
        %s369 = sand.u32 %s175, 1
        %s370 = smul.addr %s369, 32
        %s371 = scalar_lea.vmem [#allocation11], %s370
        // Predicated region
        $region69: #{tpu_custom_call.1} parent=47 // pred_check
          %p372 = pneg %p188
        $region70: #{tpu_custom_call.1} parent=47 // pred_check_branch
          %374 = sbr.rel (%p372) target = $region72
        $region71: #{tpu_custom_call.1} parent=47 // pred_region
          %375 = dma.done %s368, 512
        $region72: #{tpu_custom_call.1} parent=47 // pred_fallthru
          _
        %s376 = sand.u32 %s39, 1
        %s377 = scalar_lea.sflag [#allocation3], %s376
        %s378 = sand.u32 %s39, 1
        %s379 = smul.addr %s378, 8
        %s380 = scalar_lea.vmem [#allocation2], %s379
        %p381 = pneg %p52
        %p382 = pneg %p49
        %s383 = sand.u32 %s31, 1
        %s384 = scalar_lea.sflag [#allocation6], %s383
        %s385 = sand.u32 %s65, 1
        %s386 = smul.addr %s385, 8
        %s387 = scalar_lea.vmem [#allocation5], %s386
        %p388 = pneg %p78
        %p389 = pneg %p75
        %p390 = pneg %p99
        %p391 = pneg %p96
        %p392 = pneg %p120
        %p393 = pneg %p117
        %p394 = pneg %p141
        %p395 = pneg %p138
        %p396 = pneg %p162
        %p397 = pneg %p159
        %s398 = sand.u32 %s175, 1
        %s399 = scalar_lea.sflag [#allocation12], %s398
        %s400 = sand.u32 %s175, 1
        %s401 = smul.addr %s400, 32
        %s402 = scalar_lea.vmem [#allocation11], %s401
        %p403 = pneg %p188
        %p404 = pneg %p185
        %p405 = pneg %p214
        %p406 = pneg %p211
        %s407 = sand.u32 %s201, 1
        %s408 = scalar_lea.sflag [#allocation4], %s407
        %s409 = sand.u32 %s201, 1
        %s410 = smul.addr %s409, 24
        %s411 = scalar_lea.vmem [#allocation13], %s410
        %v412 = vld [vmem:[%s341] sm:$0xff]
        %v413 = vld [vmem:[%s350] sm:$0xff]
        %v414 = vld [vmem:[%s371] sm:$0xff]
        %v415 = vld [vmem:[%s371 + $0x8] sm:$0xff]
        %v416 = vld [vmem:[%s371 + $0x10] sm:$0xff]
        %v417 = vld [vmem:[%s371 + $0x18] sm:$0xff]
        %v418 = vld [vmem:[%s5] sm:$0x1]
        %v419 = vld [vmem:[%s5 + $0x2] sm:$0x1]
        %s420 = scalar_lea.vmem %s5, 1
        %v421 = vld [vmem:[%s420] ss:$2 sm:$0x3]
        %v422 = vld [vmem:[#allocation7] sm:$0xff]
        %v423 = vld [vmem:[#allocation7 + $0x8] sm:$0xff]
        %v424 = vld [vmem:[#allocation7 + $0x10] sm:$0xff]
        %v425 = vld [vmem:[#allocation7 + $0x18] sm:$0xff]
        %v426 = vld [vmem:[#allocation7 + $0x20] sm:$0xff]
        %v427 = vld [vmem:[#allocation7 + $0x28] sm:$0xff]
        %v428 = vld [vmem:[#allocation7 + $0x30] sm:$0xff]
        %v429 = vld [vmem:[#allocation7 + $0x38] sm:$0xff]
        %v430 = vld [vmem:[#allocation7 + $0x40] sm:$0xff]
        %v431 = vld [vmem:[#allocation7 + $0x48] sm:$0xff]
        %v432 = vld [vmem:[#allocation7 + $0x50] sm:$0xff]
        %v433 = vld [vmem:[#allocation7 + $0x58] sm:$0xff]
        %v434 = vld [vmem:[#allocation7 + $0x60] sm:$0xff]
        %v435 = vld [vmem:[#allocation7 + $0x68] sm:$0xff]
        %v436 = vld [vmem:[#allocation7 + $0x70] sm:$0xff]
        %v437 = vld [vmem:[#allocation7 + $0x78] sm:$0xff]
        %vm438 = vcmask 64512
        %v440 = vsel %vm438, %v412, 0
        %442 = vmatprep.subr.mxu0 0.0
        %443 = vmatpush1.msra.mxu0 %v413
        %444 = vmatprep.subr.mxu0 0.0
        %445 = vmatpush1.msra.mxu0 0.0
        %446 = vmatprep.subr.mxu0 0.0
        %447 = vmatpush1.msra.mxu0 0.0
        %448 = vmatprep.subr.mxu0 0.0
        %449 = vmatpush1.msra.mxu0 0.0
        %450 = vmatprep.subr.mxu0 0.0
        %451 = vmatpush1.msra.mxu0 0.0
        %452 = vmatprep.subr.mxu0 0.0
        %453 = vmatpush1.msra.mxu0 0.0
        %454 = vmatprep.subr.mxu0 0.0
        %455 = vmatpush1.msra.mxu0 0.0
        %456 = vmatprep.subr.mxu0 0.0
        %457 = vmatpush1.msra.mxu0 0.0
        %458 = vmatprep.subr.mxu0 0.0
        %459 = vmatpush1.msra.mxu0 0.0
        %460 = vmatprep.subr.mxu0 0.0
        %461 = vmatpush1.msra.mxu0 0.0
        %462 = vmatprep.subr.mxu0 0.0
        %463 = vmatpush1.msra.mxu0 0.0
        %464 = vmatprep.subr.mxu0 0.0
        %465 = vmatpush1.msra.mxu0 0.0
        %466 = vmatprep.subr.mxu0 0.0
        %467 = vmatpush1.msra.mxu0 0.0
        %468 = vmatprep.subr.mxu0 0.0
        %469 = vmatpush1.msra.mxu0 0.0
        %470 = vmatprep.subr.mxu0 0.0
        %471 = vmatpush1.msra.mxu0 0.0
        %472 = vmatprep.subr.mxu0 0.0
        %473 = vmatpush1.msra.mxu0 0.0
        %474 = vmatprep.subr.mxu0 0.0
        %475 = vmatpush1.msra.mxu0 0.0
        %476 = vmatprep.subr.mxu0 0.0
        %477 = vmatpush1.msra.mxu0 0.0
        %478 = vmatprep.subr.mxu0 0.0
        %479 = vmatpush1.msra.mxu0 0.0
        %480 = vmatprep.subr.mxu0 0.0
        %481 = vmatpush1.msra.mxu0 0.0
        %482 = vmatprep.subr.mxu0 0.0
        %483 = vmatpush1.msra.mxu0 0.0
        %484 = vmatprep.subr.mxu0 0.0
        %485 = vmatpush1.msra.mxu0 0.0
        %486 = vmatprep.subr.mxu0 0.0
        %487 = vmatpush1.msra.mxu0 0.0
        %488 = vmatprep.subr.mxu0 0.0
        %489 = vmatpush1.msra.mxu0 0.0
        %490 = vmatprep.subr.mxu0 0.0
        %491 = vmatpush1.msra.mxu0 0.0
        %492 = vmatprep.subr.mxu0 0.0
        %493 = vmatpush1.msra.mxu0 0.0
        %494 = vmatprep.subr.mxu0 0.0
        %495 = vmatpush1.msra.mxu0 0.0
        %496 = vmatprep.subr.mxu0 0.0
        %497 = vmatpush1.msra.mxu0 0.0
        %498 = vmatprep.subr.mxu0 0.0
        %499 = vmatpush1.msra.mxu0 0.0
        %500 = vmatprep.subr.mxu0 0.0
        %501 = vmatpush1.msra.mxu0 0.0
        %502 = vmatprep.subr.mxu0 0.0
        %503 = vmatpush1.msra.mxu0 0.0
        %504 = vmatprep.subr.mxu0 0.0
        %505 = vmatpush1.msra.mxu0 0.0
        %506 = vmatprep.mubr.f32.mxu0 0.0
        %507 = vmatmul.mubr.f32.gmra.mrb[0].mxu0 %v440
        %v508 = vpop.f32.mrb[0].mxu0
        %v509 = vadd.f32 0.0, %v508
        %v510 = vpop.f32.mrb[0].mxu0
        %511 = vdwg.mxu0
        %v512 = vlaneseq
        %v513 = vshrl.u32 %v512, 7
        %v514 = vsub.s32 0, %v513
        %v515 = vrot.slane %v418, %v514
        %516 = vmatprep.subr.mxu0 0.0
        %517 = vmatpush1.msra.mxu0 %v422
        %518 = vmatprep.subr.mxu0 0.0
        %519 = vmatpush1.msra.mxu0 %v423
        %520 = vmatprep.subr.mxu0 0.0
        %521 = vmatpush1.msra.mxu0 %v424
        %522 = vmatprep.subr.mxu0 0.0
        %523 = vmatpush1.msra.mxu0 %v425
        %524 = vmatprep.subr.mxu0 0.0
        %525 = vmatpush1.msra.mxu0 %v426
        %526 = vmatprep.subr.mxu0 0.0
        %527 = vmatpush1.msra.mxu0 %v427
        %528 = vmatprep.subr.mxu0 0.0
        %529 = vmatpush1.msra.mxu0 %v428
        %530 = vmatprep.subr.mxu0 0.0
        %531 = vmatpush1.msra.mxu0 %v429
        %532 = vmatprep.subr.mxu0 0.0
        %533 = vmatpush1.msra.mxu0 %v430
        %534 = vmatprep.subr.mxu0 0.0
        %535 = vmatpush1.msra.mxu0 %v431
        %536 = vmatprep.subr.mxu0 0.0
        %537 = vmatpush1.msra.mxu0 %v432
        %538 = vmatprep.subr.mxu0 0.0
        %539 = vmatpush1.msra.mxu0 %v433
        %540 = vmatprep.subr.mxu0 0.0
        %541 = vmatpush1.msra.mxu0 %v434
        %542 = vmatprep.subr.mxu0 0.0
        %543 = vmatpush1.msra.mxu0 %v435
        %544 = vmatprep.subr.mxu0 0.0
        %545 = vmatpush1.msra.mxu0 %v436
        %546 = vmatprep.subr.mxu0 0.0
        %547 = vmatpush1.msra.mxu0 %v437
        %548 = vmatprep.subr.mxu0 0.0
        %549 = vmatpush1.msra.mxu0 0.0
        %550 = vmatprep.subr.mxu0 0.0
        %551 = vmatpush1.msra.mxu0 0.0
        %552 = vmatprep.subr.mxu0 0.0
        %553 = vmatpush1.msra.mxu0 0.0
        %554 = vmatprep.subr.mxu0 0.0
        %555 = vmatpush1.msra.mxu0 0.0
        %556 = vmatprep.subr.mxu0 0.0
        %557 = vmatpush1.msra.mxu0 0.0
        %558 = vmatprep.subr.mxu0 0.0
        %559 = vmatpush1.msra.mxu0 0.0
        %560 = vmatprep.subr.mxu0 0.0
        %561 = vmatpush1.msra.mxu0 0.0
        %562 = vmatprep.subr.mxu0 0.0
        %563 = vmatpush1.msra.mxu0 0.0
        %564 = vmatprep.subr.mxu0 0.0
        %565 = vmatpush1.msra.mxu0 0.0
        %566 = vmatprep.subr.mxu0 0.0
        %567 = vmatpush1.msra.mxu0 0.0
        %568 = vmatprep.subr.mxu0 0.0
        %569 = vmatpush1.msra.mxu0 0.0
        %570 = vmatprep.subr.mxu0 0.0
        %571 = vmatpush1.msra.mxu0 0.0
        %572 = vmatprep.subr.mxu0 0.0
        %573 = vmatpush1.msra.mxu0 0.0
        %574 = vmatprep.subr.mxu0 0.0
        %575 = vmatpush1.msra.mxu0 0.0
        %576 = vmatprep.subr.mxu0 0.0
        %577 = vmatpush1.msra.mxu0 0.0
        %578 = vmatprep.subr.mxu0 0.0
        %579 = vmatpush1.msra.mxu0 0.0
        %580 = vmatprep.mubr.f32.mxu0 0.0
        %581 = vmatmul.mubr.f32.gmra.mrb[0].mxu0 %v509
        %v582 = vpop.f32.mrb[0].mxu0
        %v583 = vadd.f32 %v515, %v582
        %v584 = vpop.f32.mrb[0].mxu0
        %585 = vdwg.mxu0
        %v586 = vtanh.pop %v583
        %v587 = vld [vmem:[#allocation8] sm:$0xff]
        %v588 = vld [vmem:[#allocation8 + $0x8] sm:$0xff]
        %v589 = vld [vmem:[#allocation8 + $0x10] sm:$0xff]
        %v590 = vld [vmem:[#allocation8 + $0x18] sm:$0xff]
        %v591 = vld [vmem:[#allocation8 + $0x20] sm:$0xff]
        %v592 = vld [vmem:[#allocation8 + $0x28] sm:$0xff]
        %v593 = vld [vmem:[#allocation8 + $0x30] sm:$0xff]
        %v594 = vld [vmem:[#allocation8 + $0x38] sm:$0xff]
        %v595 = vld [vmem:[#allocation8 + $0x40] sm:$0xff]
        %v596 = vld [vmem:[#allocation8 + $0x48] sm:$0xff]
        %v597 = vld [vmem:[#allocation8 + $0x50] sm:$0xff]
        %v598 = vld [vmem:[#allocation8 + $0x58] sm:$0xff]
        %v599 = vld [vmem:[#allocation8 + $0x60] sm:$0xff]
        %v600 = vld [vmem:[#allocation8 + $0x68] sm:$0xff]
        %v601 = vld [vmem:[#allocation8 + $0x70] sm:$0xff]
        %v602 = vld [vmem:[#allocation8 + $0x78] sm:$0xff]
        %603 = vmatprep.subr.mxu0 0.0
        %604 = vmatpush1.msra.mxu0 %v586
        %605 = vmatprep.subr.mxu0 0.0
        %606 = vmatpush1.msra.mxu0 0.0
        %607 = vmatprep.subr.mxu0 0.0
        %608 = vmatpush1.msra.mxu0 0.0
        %609 = vmatprep.subr.mxu0 0.0
        %610 = vmatpush1.msra.mxu0 0.0
        %611 = vmatprep.subr.mxu0 0.0
        %612 = vmatpush1.msra.mxu0 0.0
        %613 = vmatprep.subr.mxu0 0.0
        %614 = vmatpush1.msra.mxu0 0.0
        %615 = vmatprep.subr.mxu0 0.0
        %616 = vmatpush1.msra.mxu0 0.0
        %617 = vmatprep.subr.mxu0 0.0
        %618 = vmatpush1.msra.mxu0 0.0
        %619 = vmatprep.subr.mxu0 0.0
        %620 = vmatpush1.msra.mxu0 0.0
        %621 = vmatprep.subr.mxu0 0.0
        %622 = vmatpush1.msra.mxu0 0.0
        %623 = vmatprep.subr.mxu0 0.0
        %624 = vmatpush1.msra.mxu0 0.0
        %625 = vmatprep.subr.mxu0 0.0
        %626 = vmatpush1.msra.mxu0 0.0
        %627 = vmatprep.subr.mxu0 0.0
        %628 = vmatpush1.msra.mxu0 0.0
        %629 = vmatprep.subr.mxu0 0.0
        %630 = vmatpush1.msra.mxu0 0.0
        %631 = vmatprep.subr.mxu0 0.0
        %632 = vmatpush1.msra.mxu0 0.0
        %633 = vmatprep.subr.mxu0 0.0
        %634 = vmatpush1.msra.mxu0 0.0
        %635 = vmatprep.subr.mxu0 0.0
        %636 = vmatpush1.msra.mxu0 0.0
        %637 = vmatprep.subr.mxu0 0.0
        %638 = vmatpush1.msra.mxu0 0.0
        %639 = vmatprep.subr.mxu0 0.0
        %640 = vmatpush1.msra.mxu0 0.0
        %641 = vmatprep.subr.mxu0 0.0
        %642 = vmatpush1.msra.mxu0 0.0
        %643 = vmatprep.subr.mxu0 0.0
        %644 = vmatpush1.msra.mxu0 0.0
        %645 = vmatprep.subr.mxu0 0.0
        %646 = vmatpush1.msra.mxu0 0.0
        %647 = vmatprep.subr.mxu0 0.0
        %648 = vmatpush1.msra.mxu0 0.0
        %649 = vmatprep.subr.mxu0 0.0
        %650 = vmatpush1.msra.mxu0 0.0
        %651 = vmatprep.subr.mxu0 0.0
        %652 = vmatpush1.msra.mxu0 0.0
        %653 = vmatprep.subr.mxu0 0.0
        %654 = vmatpush1.msra.mxu0 0.0
        %655 = vmatprep.subr.mxu0 0.0
        %656 = vmatpush1.msra.mxu0 0.0
        %657 = vmatprep.subr.mxu0 0.0
        %658 = vmatpush1.msra.mxu0 0.0
        %659 = vmatprep.subr.mxu0 0.0
        %660 = vmatpush1.msra.mxu0 0.0
        %661 = vmatprep.subr.mxu0 0.0
        %662 = vmatpush1.msra.mxu0 0.0
        %663 = vmatprep.subr.mxu0 0.0
        %664 = vmatpush1.msra.mxu0 0.0
        %665 = vmatprep.subr.mxu0 0.0
        %666 = vmatpush1.msra.mxu0 0.0
        %667 = vmatprep.mubr.f32.mxu0 0.0
        %668 = vmatmul.mubr.f32.gmra.mrb[0].mxu0 %v440
        %v669 = vpop.f32.mrb[0].mxu0
        %v670 = vadd.f32 0.0, %v669
        %v671 = vpop.f32.mrb[0].mxu0
        %672 = vdwg.mxu0
        %v673 = vlaneseq
        %v674 = vshrl.u32 %v673, 7
        %v675 = vsub.s32 0, %v674
        %v676 = vrot.slane %v419, %v675
        %677 = vmatprep.subr.mxu0 0.0
        %678 = vmatpush1.msra.mxu0 %v587
        %679 = vmatprep.subr.mxu0 0.0
        %680 = vmatpush1.msra.mxu0 %v588
        %681 = vmatprep.subr.mxu0 0.0
        %682 = vmatpush1.msra.mxu0 %v589
        %683 = vmatprep.subr.mxu0 0.0
        %684 = vmatpush1.msra.mxu0 %v590
        %685 = vmatprep.subr.mxu0 0.0
        %686 = vmatpush1.msra.mxu0 %v591
        %687 = vmatprep.subr.mxu0 0.0
        %688 = vmatpush1.msra.mxu0 %v592
        %689 = vmatprep.subr.mxu0 0.0
        %690 = vmatpush1.msra.mxu0 %v593
        %691 = vmatprep.subr.mxu0 0.0
        %692 = vmatpush1.msra.mxu0 %v594
        %693 = vmatprep.subr.mxu0 0.0
        %694 = vmatpush1.msra.mxu0 %v595
        %695 = vmatprep.subr.mxu0 0.0
        %696 = vmatpush1.msra.mxu0 %v596
        %697 = vmatprep.subr.mxu0 0.0
        %698 = vmatpush1.msra.mxu0 %v597
        %699 = vmatprep.subr.mxu0 0.0
        %700 = vmatpush1.msra.mxu0 %v598
        %701 = vmatprep.subr.mxu0 0.0
        %702 = vmatpush1.msra.mxu0 %v599
        %703 = vmatprep.subr.mxu0 0.0
        %704 = vmatpush1.msra.mxu0 %v600
        %705 = vmatprep.subr.mxu0 0.0
        %706 = vmatpush1.msra.mxu0 %v601
        %707 = vmatprep.subr.mxu0 0.0
        %708 = vmatpush1.msra.mxu0 %v602
        %709 = vmatprep.subr.mxu0 0.0
        %710 = vmatpush1.msra.mxu0 0.0
        %711 = vmatprep.subr.mxu0 0.0
        %712 = vmatpush1.msra.mxu0 0.0
        %713 = vmatprep.subr.mxu0 0.0
        %714 = vmatpush1.msra.mxu0 0.0
        %715 = vmatprep.subr.mxu0 0.0
        %716 = vmatpush1.msra.mxu0 0.0
        %717 = vmatprep.subr.mxu0 0.0
        %718 = vmatpush1.msra.mxu0 0.0
        %719 = vmatprep.subr.mxu0 0.0
        %720 = vmatpush1.msra.mxu0 0.0
        %721 = vmatprep.subr.mxu0 0.0
        %722 = vmatpush1.msra.mxu0 0.0
        %723 = vmatprep.subr.mxu0 0.0
        %724 = vmatpush1.msra.mxu0 0.0
        %725 = vmatprep.subr.mxu0 0.0
        %726 = vmatpush1.msra.mxu0 0.0
        %727 = vmatprep.subr.mxu0 0.0
        %728 = vmatpush1.msra.mxu0 0.0
        %729 = vmatprep.subr.mxu0 0.0
        %730 = vmatpush1.msra.mxu0 0.0
        %731 = vmatprep.subr.mxu0 0.0
        %732 = vmatpush1.msra.mxu0 0.0
        %733 = vmatprep.subr.mxu0 0.0
        %734 = vmatpush1.msra.mxu0 0.0
        %735 = vmatprep.subr.mxu0 0.0
        %736 = vmatpush1.msra.mxu0 0.0
        %737 = vmatprep.subr.mxu0 0.0
        %738 = vmatpush1.msra.mxu0 0.0
        %739 = vmatprep.subr.mxu0 0.0
        %740 = vmatpush1.msra.mxu0 0.0
        %741 = vmatprep.mubr.f32.mxu0 0.0
        %742 = vmatmul.mubr.f32.gmra.mrb[0].mxu0 %v670
        %v743 = vpop.f32.mrb[0].mxu0
        %v744 = vadd.f32 %v676, %v743
        %v745 = vpop.f32.mrb[0].mxu0
        %746 = vdwg.mxu0
        %v747 = vtanh.pop %v744
        %v748 = vmul.f32 %v747, %v414
        %v749 = vld [vmem:[#allocation10] sm:$0xff]
        %v750 = vld [vmem:[#allocation10 + $0x8] sm:$0xff]
        %v751 = vld [vmem:[#allocation10 + $0x10] sm:$0xff]
        %v752 = vld [vmem:[#allocation10 + $0x18] sm:$0xff]
        %v753 = vld [vmem:[#allocation10 + $0x20] sm:$0xff]
        %v754 = vld [vmem:[#allocation10 + $0x28] sm:$0xff]
        %v755 = vld [vmem:[#allocation10 + $0x30] sm:$0xff]
        %v756 = vld [vmem:[#allocation10 + $0x38] sm:$0xff]
        %v757 = vld [vmem:[#allocation10 + $0x40] sm:$0xff]
        %v758 = vld [vmem:[#allocation10 + $0x48] sm:$0xff]
        %v759 = vld [vmem:[#allocation10 + $0x50] sm:$0xff]
        %v760 = vld [vmem:[#allocation10 + $0x58] sm:$0xff]
        %v761 = vld [vmem:[#allocation10 + $0x60] sm:$0xff]
        %v762 = vld [vmem:[#allocation10 + $0x68] sm:$0xff]
        %v763 = vld [vmem:[#allocation10 + $0x70] sm:$0xff]
        %v764 = vld [vmem:[#allocation10 + $0x78] sm:$0xff]
        %v765 = vld [vmem:[#allocation10 + $0x80] sm:$0xff]
        %v766 = vld [vmem:[#allocation10 + $0x88] sm:$0xff]
        %v767 = vld [vmem:[#allocation10 + $0x90] sm:$0xff]
        %v768 = vld [vmem:[#allocation10 + $0x98] sm:$0xff]
        %v769 = vld [vmem:[#allocation10 + $0xa0] sm:$0xff]
        %v770 = vld [vmem:[#allocation10 + $0xa8] sm:$0xff]
        %v771 = vld [vmem:[#allocation10 + $0xb0] sm:$0xff]
        %v772 = vld [vmem:[#allocation10 + $0xb8] sm:$0xff]
        %v773 = vld [vmem:[#allocation10 + $0xc0] sm:$0xff]
        %v774 = vld [vmem:[#allocation10 + $0xc8] sm:$0xff]
        %v775 = vld [vmem:[#allocation10 + $0xd0] sm:$0xff]
        %v776 = vld [vmem:[#allocation10 + $0xd8] sm:$0xff]
        %v777 = vld [vmem:[#allocation10 + $0xe0] sm:$0xff]
        %v778 = vld [vmem:[#allocation10 + $0xe8] sm:$0xff]
        %v779 = vld [vmem:[#allocation10 + $0xf0] sm:$0xff]
        %v780 = vld [vmem:[#allocation10 + $0xf8] sm:$0xff]
        %781 = vmatprep.subr.mxu0 0.0
        %782 = vmatpush1.msra.mxu0 %v748
        %783 = vmatprep.subr.mxu0 0.0
        %784 = vmatpush1.msra.mxu0 0.0
        %785 = vmatprep.subr.mxu0 0.0
        %786 = vmatpush1.msra.mxu0 0.0
        %787 = vmatprep.subr.mxu0 0.0
        %788 = vmatpush1.msra.mxu0 0.0
        %789 = vmatprep.subr.mxu0 0.0
        %790 = vmatpush1.msra.mxu0 0.0
        %791 = vmatprep.subr.mxu0 0.0
        %792 = vmatpush1.msra.mxu0 0.0
        %793 = vmatprep.subr.mxu0 0.0
        %794 = vmatpush1.msra.mxu0 0.0
        %795 = vmatprep.subr.mxu0 0.0
        %796 = vmatpush1.msra.mxu0 0.0
        %797 = vmatprep.subr.mxu0 0.0
        %798 = vmatpush1.msra.mxu0 0.0
        %799 = vmatprep.subr.mxu0 0.0
        %800 = vmatpush1.msra.mxu0 0.0
        %801 = vmatprep.subr.mxu0 0.0
        %802 = vmatpush1.msra.mxu0 0.0
        %803 = vmatprep.subr.mxu0 0.0
        %804 = vmatpush1.msra.mxu0 0.0
        %805 = vmatprep.subr.mxu0 0.0
        %806 = vmatpush1.msra.mxu0 0.0
        %807 = vmatprep.subr.mxu0 0.0
        %808 = vmatpush1.msra.mxu0 0.0
        %809 = vmatprep.subr.mxu0 0.0
        %810 = vmatpush1.msra.mxu0 0.0
        %811 = vmatprep.subr.mxu0 0.0
        %812 = vmatpush1.msra.mxu0 0.0
        %813 = vmatprep.subr.mxu0 0.0
        %814 = vmatpush1.msra.mxu0 0.0
        %815 = vmatprep.subr.mxu0 0.0
        %816 = vmatpush1.msra.mxu0 0.0
        %817 = vmatprep.subr.mxu0 0.0
        %818 = vmatpush1.msra.mxu0 0.0
        %819 = vmatprep.subr.mxu0 0.0
        %820 = vmatpush1.msra.mxu0 0.0
        %821 = vmatprep.subr.mxu0 0.0
        %822 = vmatpush1.msra.mxu0 0.0
        %823 = vmatprep.subr.mxu0 0.0
        %824 = vmatpush1.msra.mxu0 0.0
        %825 = vmatprep.subr.mxu0 0.0
        %826 = vmatpush1.msra.mxu0 0.0
        %827 = vmatprep.subr.mxu0 0.0
        %828 = vmatpush1.msra.mxu0 0.0
        %829 = vmatprep.subr.mxu0 0.0
        %830 = vmatpush1.msra.mxu0 0.0
        %831 = vmatprep.subr.mxu0 0.0
        %832 = vmatpush1.msra.mxu0 0.0
        %833 = vmatprep.subr.mxu0 0.0
        %834 = vmatpush1.msra.mxu0 0.0
        %835 = vmatprep.subr.mxu0 0.0
        %836 = vmatpush1.msra.mxu0 0.0
        %837 = vmatprep.subr.mxu0 0.0
        %838 = vmatpush1.msra.mxu0 0.0
        %839 = vmatprep.subr.mxu0 0.0
        %840 = vmatpush1.msra.mxu0 0.0
        %841 = vmatprep.subr.mxu0 0.0
        %842 = vmatpush1.msra.mxu0 0.0
        %843 = vmatprep.subr.mxu0 0.0
        %844 = vmatpush1.msra.mxu0 0.0
        %845 = vmatprep.mubr.f32.mxu0 0.0
        %846 = vmatmul.mubr.f32.gmra.mrb[0].mxu0 %v440
        %v847 = vpop.f32.mrb[0].mxu0
        %v848 = vadd.f32 0.0, %v847
        %v849 = vpop.f32.mrb[0].mxu0
        %850 = vdwg.mxu0
        %v852 = vlaneseq
        %v853 = vshrl.u32 %v852, 7
        %v854 = vsub.s32 0, %v853
        %v855 = vrot.slane %v421, %v854
        %v856 = vlaneseq
        %v857 = vshrl.u32 %v856, 7
        %v858 = vsub.s32 1, %v857
        %v859 = vrot.slane %v421, %v858
        %862 = vmatprep.subr.mxu0 %v750
        %863 = vmatpush1.msra.mxu0 %v749
        %864 = vmatprep.subr.mxu0 %v752
        %865 = vmatpush1.msra.mxu0 %v751
        %866 = vmatprep.subr.mxu0 %v754
        %867 = vmatpush1.msra.mxu0 %v753
        %868 = vmatprep.subr.mxu0 %v756
        %869 = vmatpush1.msra.mxu0 %v755
        %870 = vmatprep.subr.mxu0 %v758
        %871 = vmatpush1.msra.mxu0 %v757
        %872 = vmatprep.subr.mxu0 %v760
        %873 = vmatpush1.msra.mxu0 %v759
        %874 = vmatprep.subr.mxu0 %v762
        %875 = vmatpush1.msra.mxu0 %v761
        %876 = vmatprep.subr.mxu0 %v764
        %877 = vmatpush1.msra.mxu0 %v763
        %878 = vmatprep.subr.mxu0 %v766
        %879 = vmatpush1.msra.mxu0 %v765
        %880 = vmatprep.subr.mxu0 %v768
        %881 = vmatpush1.msra.mxu0 %v767
        %882 = vmatprep.subr.mxu0 %v770
        %883 = vmatpush1.msra.mxu0 %v769
        %884 = vmatprep.subr.mxu0 %v772
        %885 = vmatpush1.msra.mxu0 %v771
        %886 = vmatprep.subr.mxu0 %v774
        %887 = vmatpush1.msra.mxu0 %v773
        %888 = vmatprep.subr.mxu0 %v776
        %889 = vmatpush1.msra.mxu0 %v775
        %890 = vmatprep.subr.mxu0 %v778
        %891 = vmatpush1.msra.mxu0 %v777
        %892 = vmatprep.subr.mxu0 %v780
        %893 = vmatpush1.msra.mxu0 %v779
        %894 = vmatprep.subr.mxu0 0.0
        %895 = vmatpush1.msra.mxu0 0.0
        %896 = vmatprep.subr.mxu0 0.0
        %897 = vmatpush1.msra.mxu0 0.0
        %898 = vmatprep.subr.mxu0 0.0
        %899 = vmatpush1.msra.mxu0 0.0
        %900 = vmatprep.subr.mxu0 0.0
        %901 = vmatpush1.msra.mxu0 0.0
        %902 = vmatprep.subr.mxu0 0.0
        %903 = vmatpush1.msra.mxu0 0.0
        %904 = vmatprep.subr.mxu0 0.0
        %905 = vmatpush1.msra.mxu0 0.0
        %906 = vmatprep.subr.mxu0 0.0
        %907 = vmatpush1.msra.mxu0 0.0
        %908 = vmatprep.subr.mxu0 0.0
        %909 = vmatpush1.msra.mxu0 0.0
        %910 = vmatprep.subr.mxu0 0.0
        %911 = vmatpush1.msra.mxu0 0.0
        %912 = vmatprep.subr.mxu0 0.0
        %913 = vmatpush1.msra.mxu0 0.0
        %914 = vmatprep.subr.mxu0 0.0
        %915 = vmatpush1.msra.mxu0 0.0
        %916 = vmatprep.subr.mxu0 0.0
        %917 = vmatpush1.msra.mxu0 0.0
        %918 = vmatprep.subr.mxu0 0.0
        %919 = vmatpush1.msra.mxu0 0.0
        %920 = vmatprep.subr.mxu0 0.0
        %921 = vmatpush1.msra.mxu0 0.0
        %922 = vmatprep.subr.mxu0 0.0
        %923 = vmatpush1.msra.mxu0 0.0
        %924 = vmatprep.subr.mxu0 0.0
        %925 = vmatpush1.msra.mxu0 0.0
        %926 = vmatprep.mubr.f32.mxu0 0.0
        %927 = vmatmul.mubr.f32.gmra.mrb[0].mxu0 %v848
        %v928 = vpop.f32.mrb[0].mxu0
        %v929 = vadd.f32 %v855, %v928
        %v930 = vpop.f32.mrb[0].mxu0
        %v931 = vadd.f32 %v859, %v930
        %932 = vdwg.mxu0
        %v933 = vtanh.pop %v929
        %v934 = vtanh.pop %v931
        %v935 = vmul.f32 %v933, %v415
        %v936 = vmul.f32 %v934, %v416
        %v937 = vmul.f32 %v936, 1.442695
        %v938 = vpow.pop %v937
        %v939 = vmul.f32 %v938, %v417
        %v940 = vadd.f32 %v935, %v939
        %941 = vst [vmem:[%s411] sm:$0xff] %v935
        %942 = vst [vmem:[%s411 + $0x8] sm:$0xff] %v938
        %943 = vst [vmem:[%s411 + $0x10] sm:$0xff] %v940
        %s944 = sand.u32 %s201, 1
        %s945 = scalar_lea.sflag [#allocation4], %s944
        %s946 = sand.u32 %s201, 1
        %s947 = smul.addr %s946, 24
        %s948 = scalar_lea.vmem [#allocation13], %s947
        // Predicated region
        $region73: #{tpu_custom_call.1} parent=47 // pred_check
          %p949 = pneg %p211
        $region74: #{tpu_custom_call.1} parent=47 // pred_check_branch
          %951 = sbr.rel (%p949) target = $region76
        $region75: #{tpu_custom_call.1} parent=47 // pred_region
          %s953 = ssub.s32 384, 384
          %954 = vsyncadd %s945, %s953
          %s955 = smul.addr %s31, 3
          %s956 = smul.addr %s955, 128
          %s957 = scalar_lea.hbm %s7, %s956
          %s959 = sshll.u32 %s948, 4
          %s960 = int_to_ptr.vmem [resolvable:$true] %s959
          %962 = dma.vmem_to_hbm [thread:$0]  %s960, 384, %s957, %s945
        $region76: #{tpu_custom_call.1} parent=47 // pred_fallthru
          _
      $region48: #{tpu_custom_call.1} parent=5 // pred_fallthru
        _
      %p963 = scmp.le.s32.totalorder 2, %s26
      // Predicated region
      $region77: #{tpu_custom_call.1} parent=5 // pred_check
        %p964 = pneg %p963
      $region78: #{tpu_custom_call.1} parent=5 // pred_check_branch
        %966 = sbr.rel (%p964) target = $region80
      $region79: #{tpu_custom_call.1} parent=5 // pred_region
        %s967 = ssub.s32 %s26, 2
        // Predicated region
        $region81: #{tpu_custom_call.1} parent=79 // pred_check
          %p968 = pneg %p217
        $region82: #{tpu_custom_call.1} parent=79 // pred_check_branch
          %970 = sbr.rel (%p968) target = $region84
        $region83: #{tpu_custom_call.1} parent=79 // pred_region
          %s971 = sand.u32 %s202, 1
          %s972 = scalar_lea.sflag [#allocation4], %s971
          %s973 = sand.u32 %s202, 1
          %s974 = smul.addr %s973, 24
          %s975 = scalar_lea.vmem [#allocation13], %s974
          %976 = dma.done %s972, 384
        $region84: #{tpu_custom_call.1} parent=79 // pred_fallthru
          _
      $region80: #{tpu_custom_call.1} parent=5 // pred_fallthru
        _
    $region6: #{tpu_custom_call.1} parent=1 // loop_footer
      %s30 = sadd.s32 1, %s26
    $region7: #{tpu_custom_call.1} parent=1 // loop_footer_branch
      %25 = sbr.rel target = $region3
    $region8: #{tpu_custom_call.1} parent=1 // loop_exit
      _
    %977 = vsyncpa [#allocation3], 1
    %s978 = scalar_lea.sflag [#allocation3], 1
    %979 = vsyncpa %s978, 1
    %980 = vsyncpa [#allocation6], 1
    %s981 = scalar_lea.sflag [#allocation6], 1
    %982 = vsyncpa %s981, 1
    %983 = vsyncpa [#allocation9], 1
    %984 = vsyncpa [#allocation12], 1
    %s985 = scalar_lea.sflag [#allocation12], 1
    %986 = vsyncpa %s985, 1
    %987 = vsyncpa [#allocation4], 1
    %s988 = scalar_lea.sflag [#allocation4], 1
    %989 = vsyncpa %s988, 1

</llo_original>
